<compile_context>
chip_gen: v7x
topology: tpu7x:2x2x1
jax: 0.10.0
libtpu: 0.0.40
codegen_flags: <defaults>
</compile_context>

<pallas_src>
import functools
import math

import jax
import jax.numpy as jnp
from jax.experimental import pallas as pl
from jax.experimental.pallas import tpu as pltpu


def _round_up(x, m):
    return ((x + m - 1) // m) * m


def _sublane_granule(dtype):
    # f32 -> 8, bf16 -> 16, int8/fp8 -> 32 (sub-32-bit dtypes pack sublanes)
    return max(8, 32 // jnp.dtype(dtype).itemsize)


def _default_config():
    """Generation-specific (tile_t, tile_v, vmem_limit_bytes)."""
    vmem_cap = 128 * 1024 * 1024
    try:
        vmem_cap = int(getattr(pltpu.get_tpu_info(), "vmem_capacity_bytes",
                               vmem_cap))
    except Exception:
        pass
    kind = ""
    try:
        kind = jax.devices()[0].device_kind.lower()
    except Exception:
        pass
    if vmem_cap <= 64 * 1024 * 1024:
        # v7x-class: 64 MiB VMEM per TensorCore, MXU/HBM crossover ~620 rows.
        return 512, 512, 48 * 1024 * 1024
    if ("v5 lite" in kind) or ("v5e" in kind) or ("v5litepod" in kind):
        # v5e: crossover ~240 rows; spend VMEM on pipeline depth, not tiles.
        return 256, 512, 100 * 1024 * 1024
    # v6e-class (128 MiB VMEM): crossover ~650 rows.
    return 512, 1024, 100 * 1024 * 1024


def _pick_tile_v(vp_local, default_tile_v, w_granule):
    if vp_local <= 128:
        return _round_up(vp_local, w_granule)
    if vp_local <= default_tile_v:
        return _round_up(vp_local, 256)          # MXU on v6e/v7x is 2x256^2
    return default_tile_v                        # defaults are 256-aligned


def _pick_tile_t(t, tile_t, granule):
    tile_t = max(granule, _round_up(min(tile_t, _round_up(t, granule)), granule))
    # megacore: keep >= 2 T tiles when there is enough work (the T axis is the
    # only "parallel" axis; a single tile would idle one TensorCore on v7x).
    if t > granule and _round_up(t, tile_t) // tile_t < 2:
        tile_t = _round_up((t + 1) // 2, granule)
    return max(tile_t, granule)


def prepare_weight_shards(weight_shards, *, tile_v=None):
    """Pad the [Q, Vp, Ep] shard stack once (hoisted out of the forward).

    Returns (padded_shards, vp_local, ep_local); pass all three to the
    forward so the per-call jnp.pad of the whole table disappears.
    Padding rows/cols are zero and must stay zero.
    """
    q, vp, ep = weight_shards.shape
    w_granule = _sublane_granule(weight_shards.dtype)
    if tile_v is None:
        _, dft_v, _ = _default_config()
        tile_v = _pick_tile_v(vp, dft_v, w_granule)
    tile_v = _round_up(tile_v, w_granule)
    vp_p = _round_up(vp, tile_v)
    ep_p = _round_up(ep, 128)
    if (vp_p, ep_p) != (vp, ep):
        weight_shards = jnp.pad(
            weight_shards, ((0, 0), (0, vp_p - vp), (0, ep_p - ep)))
    return weight_shards, vp, ep


def _active_tile_schedule(ids_flat, n_ttiles, tile_t, q, vp_local, tile_v,
                          n_vtiles):
    """Per T-tile sorted unique list of weight tiles hit by at least one id.

    Returns int32 tables (SMEM scalar-prefetch operands):
      flat_tbl  [n_ttiles, max_slots]  flat row-block index into the 2-D
                                       padded weight (c * n_vtiles + v)
      start_tbl [n_ttiles, max_slots]  logical vocab start of that tile
      cnt_tbl   [n_ttiles]             number of active slots
    Unused slots repeat the last active tile so the weight DMA block index
    does not change (Pallas skips the copy) and are masked with cnt_tbl.
    """
    total_tiles = q * n_vtiles
    max_slots = max(1, min(tile_t, total_tiles))

    ids2 = ids_flat.reshape(n_ttiles, tile_t)
    valid = jnp.logical_and(ids2 >= 0, ids2 < q * vp_local)
    safe = jnp.where(valid, ids2, 0)
    c_idx = jnp.clip(safe // vp_local, 0, q - 1)
    v_idx = jnp.clip((safe - c_idx * vp_local) // tile_v, 0, n_vtiles - 1)
    flat = jnp.where(valid, c_idx * n_vtiles + v_idx, total_tiles)  # sentinel
    flat_sorted = jnp.sort(flat, axis=1)
    is_new = jnp.concatenate(
        [jnp.ones((n_ttiles, 1), dtype=bool),
         flat_sorted[:, 1:] != flat_sorted[:, :-1]], axis=1)
    is_active = jnp.logical_and(is_new, flat_sorted < total_tiles)
    cnt_tbl = is_active.sum(axis=1, dtype=jnp.int32)
    pos = jnp.cumsum(is_active, axis=1) - 1
    rows = jnp.broadcast_to(jnp.arange(n_ttiles)[:, None], flat_sorted.shape)
    cols = jnp.where(is_active, pos, max_slots)          # OOB -> dropped
    flat_tbl = jnp.zeros((n_ttiles, max_slots), jnp.int32)
    flat_tbl = flat_tbl.at[rows, cols].set(flat_sorted.astype(jnp.int32),
                                           mode="drop")
    slot = jnp.arange(max_slots, dtype=jnp.int32)[None, :]
    last = jnp.take_along_axis(flat_tbl,
                               jnp.maximum(cnt_tbl - 1, 0)[:, None], axis=1)
    flat_tbl = jnp.where(slot < cnt_tbl[:, None], flat_tbl, last)
    c_of = flat_tbl // n_vtiles
    v_of = flat_tbl - c_of * n_vtiles
    start_tbl = (c_of * vp_local + v_of * tile_v).astype(jnp.int32)
    return flat_tbl, start_tbl, cnt_tbl, max_slots


# ---------------------------------------------------------------------------
# Kernels
# ---------------------------------------------------------------------------
def _embed_resident_kernel(flat_tbl, start_tbl, cnt_tbl,
                           ids_ref, w_ref, out_ref, acc_ref, *, tile_v):
    """Shard resident in VMEM; in-kernel reduction over only the active tiles."""
    ti = pl.program_id(0)
    acc_ref[...] = jnp.zeros_like(acc_ref)
    ids = ids_ref[...]                                   # [tile_t, 1] int32

    @pl.loop(0, cnt_tbl[ti])                             # dynamic trip count
    def _(s):
        start = start_tbl[ti, s]                         # logical vocab start
        off = pl.multiple_of(flat_tbl[ti, s] * tile_v, tile_v)
        shifted = ids - start                            # <0 / >=tile_v -> no match
        iota = jax.lax.broadcasted_iota(jnp.int32, (ids.shape[0], tile_v), 1)
        onehot = (iota == shifted).astype(w_ref.dtype)
        acc_ref[...] += jnp.dot(onehot, w_ref[pl.ds(off, tile_v), :],
                                preferred_element_type=jnp.float32)

    out_ref[...] = acc_ref[...].astype(out_ref.dtype)


def _embed_stream_kernel(flat_tbl, start_tbl, cnt_tbl,
                         ids_ref, w_ref, out_ref, acc_ref):
    """One (T-tile, active-slot) grid step; weight tile streamed via BlockSpec."""
    ti = pl.program_id(0)
    s = pl.program_id(1)

    # First/last-slot accumulation pattern is only valid because the slot
    # axis is "arbitrary" (sequential, in-order) and the output block index
    # ignores it.
    @pl.when(s == 0)
    def _():
        acc_ref[...] = jnp.zeros_like(acc_ref)

    @pl.when(s < cnt_tbl[ti])                            # skip padded slots
    def _():
        start = start_tbl[ti, s]
        ids = ids_ref[...]
        shifted = ids - start
        tile_v = w_ref.shape[0]
        iota = jax.lax.broadcasted_iota(jnp.int32, (ids.shape[0], tile_v), 1)
        onehot = (iota == shifted).astype(w_ref.dtype)
        acc_ref[...] += jnp.dot(onehot, w_ref[...],
                                preferred_element_type=jnp.float32)

    @pl.when(s == pl.num_programs(1) - 1)
    def _():
        out_ref[...] = acc_ref[...].astype(out_ref.dtype)


# ---------------------------------------------------------------------------
# Forward wrapper
# ---------------------------------------------------------------------------
def vocab_parallel_embedding_2p5d(ids_chunk, weight_shards, *,
                                  vp_local=None, ep_local=None,
                                  tile_t=None, tile_v=None,
                                  out_dtype=None,
                                  force_streaming=False,
                                  vmem_limit_bytes=None):
    """Forward of VocabParallelEmbedding2p5D for one (row, col) rank.

    ids_chunk:     [Bc, S] int32 -- this col rank's scatter chunk of the batch
    weight_shards: [Q, Vp(+pad), Ep(+pad)] -- one vocab shard per col rank,
                   already sliced to this row rank's embed_dim slice.  If
                   pre-padded (prepare_weight_shards), pass vp_local/ep_local.
    returns:       [Bc, S, Ep] in out_dtype (default: weight dtype).
    """
    q, vp_phys, ep_phys = weight_shards.shape
    vp_local = vp_phys if vp_local is None else vp_local
    ep_local = ep_phys if ep_local is None else ep_local
    out_dtype = weight_shards.dtype if out_dtype is None else out_dtype

    bc, s_len = ids_chunk.shape
    t = bc * s_len

    dft_t, dft_v, dft_vmem = _default_config()
    if vmem_limit_bytes is None:
        vmem_limit_bytes = dft_vmem
    w_granule = _sublane_granule(weight_shards.dtype)
    o_granule = _sublane_granule(out_dtype)
    if tile_v is None:
        tile_v = _pick_tile_v(vp_local, dft_v, w_granule)
    tile_v = _round_up(tile_v, w_granule)
    if tile_t is None:
        tile_t = dft_t
    tile_t = _pick_tile_t(t, tile_t, o_granule)

    # ---- weight padding (hoist with prepare_weight_shards; rows must be 0) --
    ep_p = _round_up(ep_phys, 128)               # lane-dense output stores
    vp_p = _round_up(vp_phys, tile_v)
    if (vp_p, ep_p) != (vp_phys, ep_phys):
        weight_shards = jnp.pad(
            weight_shards, ((0, 0), (0, vp_p - vp_phys), (0, ep_p - ep_phys)))
    w2 = weight_shards.reshape(q * vp_p, ep_p)   # flat [Q*Vp_p, Ep_p]

    # ---- ids padding ---------------------------------------------------------
    t_p = _round_up(t, tile_t)
    ids_flat = ids_chunk.reshape(t, 1).astype(jnp.int32)
    if t_p != t:
        # -1 is outside every shard's vocab range -> padded rows stay zero.
        ids_flat = jnp.pad(ids_flat, ((0, t_p - t), (0, 0)), constant_values=-1)
    n_ttiles = t_p // tile_t
    n_vtiles = vp_p // tile_v

    flat_tbl, start_tbl, cnt_tbl, max_slots = _active_tile_schedule(
        ids_flat, n_ttiles, tile_t, q, vp_local, tile_v, n_vtiles)

    # ---- path selection ------------------------------------------------------
    shard_bytes = q * vp_p * ep_p * jnp.dtype(weight_shards.dtype).itemsize
    per_tile_bufs = (2 * tile_t * ep_p * jnp.dtype(out_dtype).itemsize  # out (x2)
                     + tile_t * ep_p * 4                                # f32 acc
                     + 4 * tile_t * 4)                                  # ids
    use_resident = ((not force_streaming)
                    and shard_bytes + per_tile_bufs <= int(0.7 * vmem_limit_bytes))

    if use_resident:
        kernel = functools.partial(_embed_resident_kernel, tile_v=tile_v)
        grid_spec = pltpu.PrefetchScalarGridSpec(
            num_scalar_prefetch=3,
            grid=(n_ttiles,),
            in_specs=[
                pl.BlockSpec((tile_t, 1), lambda ti, ft, st, ct: (ti, 0)),
                # constant index_map -> shard DMA'd into VMEM exactly once
                pl.BlockSpec((q * vp_p, ep_p), lambda ti, ft, st, ct: (0, 0)),
            ],
            out_specs=pl.BlockSpec((tile_t, ep_p), lambda ti, ft, st, ct: (ti, 0)),
            scratch_shapes=[pltpu.VMEM((tile_t, ep_p), jnp.float32)],
        )
        out = pl.pallas_call(
            kernel,
            out_shape=jax.ShapeDtypeStruct((t_p, ep_p), out_dtype),
            grid_spec=grid_spec,
            compiler_params=pltpu.CompilerParams(
                dimension_semantics=("parallel",),
                vmem_limit_bytes=vmem_limit_bytes),
        )(flat_tbl, start_tbl, cnt_tbl, ids_flat, w2)
    else:
        def w_index(ti, s, ft, st, ct):
            return (ft[ti, s], 0)                # flat tile == row-block index

        def run(weight_spec):
            grid_spec = pltpu.PrefetchScalarGridSpec(
                num_scalar_prefetch=3,
                grid=(n_ttiles, max_slots),
                in_specs=[
                    pl.BlockSpec((tile_t, 1), lambda ti, s, ft, st, ct: (ti, 0)),
                    weight_spec,
                ],
                out_specs=pl.BlockSpec((tile_t, ep_p),
                                       lambda ti, s, ft, st, ct: (ti, 0)),
                scratch_shapes=[pltpu.VMEM((tile_t, ep_p), jnp.float32)],
            )
            return pl.pallas_call(
                _embed_stream_kernel,
                out_shape=jax.ShapeDtypeStruct((t_p, ep_p), out_dtype),
                grid_spec=grid_spec,
                compiler_params=pltpu.CompilerParams(
                    dimension_semantics=("parallel", "arbitrary"),
                    vmem_limit_bytes=vmem_limit_bytes),
            )(flat_tbl, start_tbl, cnt_tbl, ids_flat, w2)

        try:
            # 3-deep weight buffering hides the DMA gap at T-tile boundaries.
            out = run(pl.BlockSpec((tile_v, ep_p), w_index,
                                   pipeline_mode=pl.Buffered(3)))
        except Exception:
            # pipeline_mode unsupported in this JAX version -> default 2-deep.
            out = run(pl.BlockSpec((tile_v, ep_p), w_index))

    # drop padding (ep slice is a no-op when Ep % 128 == 0), restore [Bc,S,Ep]
    return out[:t, :ep_local].reshape(bc, s_len, ep_local)


# ---------------------------------------------------------------------------
# Example / self-test
# ---------------------------------------------------------------------------
if __name__ == "__main__":
    # Synthetic 2.5D config (simulate rank row=0, col=0)
    num_embeddings = 512
    embedding_dim = 256
    tesseract_dim = 2                      # Q
    padding_idx = 0
    batch, seq = 4, 10

    vp = num_embeddings // tesseract_dim   # vocab rows per partition   = 256
    ep = embedding_dim // tesseract_dim    # embed dims per partition   = 128
    row_rank, col_rank = 0, 0

    key = jax.random.PRNGKey(0)
    k_w, k_ids = jax.random.split(key)

    # Deterministic "normal_" init of the FULL weight, then zero padding row
    # (reproduces _fill_padding_idx_with_zero for the forward pass).
    std = 1.0 / math.sqrt(embedding_dim)
    full_weight = std * jax.random.normal(
        k_w, (num_embeddings, embedding_dim), dtype=jnp.float32)
    full_weight = full_weight.at[padding_idx].set(0.0)

    # Shards held by the COL group at this ROW rank, stored bf16 (MXU-native):
    weight_shards = jnp.stack(
        [full_weight[c * vp:(c + 1) * vp,
                     row_rank * ep:(row_rank + 1) * ep]
         for c in range(tesseract_dim)], axis=0).astype(jnp.bfloat16)

    ids = jax.random.randint(k_ids, (batch, seq), 0, num_embeddings,
                             dtype=jnp.int32)

    # reduce_scatter along dim 0 (batch): this col rank keeps chunk `col_rank`
    bc = batch // tesseract_dim
    ids_chunk = ids[col_rank * bc:(col_rank + 1) * bc]    # [Bc, S]

    # padding hoisted out of the forward (no-op here: 256 % 8, 128 % 128)
    w_prep, vp_local, ep_local = prepare_weight_shards(weight_shards)

    # Default path: VMEM-resident shard, in-kernel active-tile reduction.
    out_resident = vocab_parallel_embedding_2p5d(
        ids_chunk, w_prep, vp_local=vp_local, ep_local=ep_local)
    # Streaming path forced with small tiles: exercises scalar-prefetch
    # active-tile indexing, the multi-slot accumulation and ids/T padding.
    out_stream = vocab_parallel_embedding_2p5d(
        ids_chunk, w_prep, vp_local=vp_local, ep_local=ep_local,
        tile_t=8, tile_v=128, out_dtype=jnp.float32, force_streaming=True)
    out_resident, out_stream = jax.block_until_ready((out_resident, out_stream))

    # Pure-JAX reference of the same semantics (gather from the bf16 table;
    # the exact one-hot selection reproduces it bit-for-bit).
    table = full_weight[:, row_rank * ep:(row_rank + 1) * ep].astype(jnp.bfloat16)
    ref_f32 = table[ids_chunk].astype(jnp.float32)

    assert out_resident.shape == (bc, seq, ep)
    assert out_resident.dtype == weight_shards.dtype        # matches module dtype
    assert jnp.allclose(out_resident.astype(jnp.float32), ref_f32,
                        atol=1e-6, rtol=1e-6)
    assert out_stream.shape == (bc, seq, ep)
    assert jnp.allclose(out_stream, ref_f32, atol=1e-6, rtol=1e-6)

    print("KERNEL_OK")
</pallas_src>

<mosaic_0001>
module attributes {stable_mosaic.version = 11 : i64} {
  func.func @_embed_resident_kernel(%arg0: i32, %arg1: memref<2x2xi32, #tpu.memory_space<smem>>, %arg2: memref<2x2xi32, #tpu.memory_space<smem>>, %arg3: memref<2xi32, #tpu.memory_space<smem>>, %arg4: memref<16x1xi32, #tpu.memory_space<vmem>>, %arg5: memref<512x128xbf16, #tpu.memory_space<vmem>>, %arg6: memref<16x128xbf16, #tpu.memory_space<vmem>>, %arg7: memref<16x128xf32, #tpu.memory_space<vmem>>) attributes {dimension_semantics = [#tpu.dimension_semantics<parallel>], iteration_bounds = array<i64: 2>, scalar_prefetch = 3 : i64, scratch_operands = 1 : i64, tpu.core_type = #tpu.core_type<tc>, window_params = [{transform_indices = @transform_0, window_bounds = array<i64: 16, 1>}, {pipeline_mode = #tpu.pipeline_mode<synchronous>, transform_indices = @transform_1, window_bounds = array<i64: 512, 128>}, {transform_indices = @transform_2, window_bounds = array<i64: 16, 128>}]} {
    %cst = arith.constant 0.000000e+00 : f32
    %0 = vector.broadcast %cst : f32 to vector<16x128xf32>
    %c0 = arith.constant 0 : index
    %c0_0 = arith.constant 0 : index
    %1 = vector.load %arg7[%c0, %c0_0] : memref<16x128xf32, #tpu.memory_space<vmem>>, vector<16x128xf32>
    tpu.vector_store %arg7[%c0, %c0_0], %0 {strides = array<i32>} : memref<16x128xf32, #tpu.memory_space<vmem>>, vector<16x128xf32>,
    %c0_1 = arith.constant 0 : index
    %c0_2 = arith.constant 0 : index
    %2 = vector.load %arg4[%c0_1, %c0_2] : memref<16x1xi32, #tpu.memory_space<vmem>>, vector<16x1xi32>
    %3 = arith.index_cast %arg0 : i32 to index
    %4 = memref.load %arg3[%3] : memref<2xi32, #tpu.memory_space<smem>>
    %c0_i32 = arith.constant 0 : i32
    %5 = arith.subi %4, %c0_i32 : i32
    %c1_i32 = arith.constant 1 : i32
    %c1_i32_3 = arith.constant 1 : i32
    %6 = arith.subi %c1_i32, %c1_i32_3 : i32
    %7 = arith.addi %5, %6 : i32
    %c1_i32_4 = arith.constant 1 : i32
    %8 = arith.divsi %7, %c1_i32_4 : i32
    %c1_i32_5 = arith.constant 1 : i32
    %c0_i32_6 = arith.constant 0 : i32
    %c0_i32_7 = arith.constant 0 : i32
    %9 = arith.subi %8, %c0_i32_7 : i32
    %10 = arith.addi %c0_i32_7, %9 : i32
    %c1_i32_8 = arith.constant 1 : i32
    scf.for %arg8 = %c0_i32_7 to %10 step %c1_i32_8  : i32 {
      %14 = arith.muli %arg8, %c1_i32_5 : i32
      %15 = arith.addi %c0_i32_6, %14 : i32
      %16 = arith.index_cast %arg0 : i32 to index
      %17 = arith.index_cast %15 : i32 to index
      %18 = memref.load %arg2[%16, %17] : memref<2x2xi32, #tpu.memory_space<smem>>
      %19 = arith.index_cast %arg0 : i32 to index
      %20 = arith.index_cast %15 : i32 to index
      %21 = memref.load %arg1[%19, %20] : memref<2x2xi32, #tpu.memory_space<smem>>
      %c256_i32 = arith.constant 256 : i32
      %22 = arith.muli %21, %c256_i32 : i32
      %23 = tpu.assume_multiple %22, 256 : i32
      %24 = vector.broadcast %18 : i32 to vector<16x1xi32>
      %25 = arith.subi %2, %24 : vector<16x1xi32>
      %26 = tpu.iota {dimensions = array<i32: 1>} : vector<16x256xi32>
      %27 = vector.broadcast %25 : vector<16x1xi32> to vector<16x256xi32>
      %28 = arith.cmpi eq, %26, %27 : vector<16x256xi32>
      %29 = arith.extui %28 : vector<16x256xi1> to vector<16x256xi32>
      %30 = arith.sitofp %29 : vector<16x256xi32> to vector<16x256xf32>
      %31 = arith.truncf %30 : vector<16x256xf32> to vector<16x256xbf16>
      %c0_13 = arith.constant 0 : index
      %c0_14 = arith.constant 0 : index
      %32 = vector.load %arg7[%c0_13, %c0_14] : memref<16x128xf32, #tpu.memory_space<vmem>>, vector<16x128xf32>
      %33 = arith.index_cast %23 : i32 to index
      %c0_15 = arith.constant 0 : index
      %34 = vector.load %arg5[%33, %c0_15] : memref<512x128xbf16, #tpu.memory_space<vmem>>, vector<256x128xbf16>
      %cst_16 = arith.constant dense<0.000000e+00> : vector<16x128xf32>
      %35 = tpu.matmul %31, %34, %cst_16 {dimension_numbers = #tpu.dot_dimension_numbers<[1], [0], [0], [1], [0, 0, 1, 1], [], []>} : vector<16x256xbf16>, vector<256x128xbf16>, vector<16x128xf32> -> vector<16x128xf32>
      %36 = arith.addf %32, %35 : vector<16x128xf32>
      %c0_17 = arith.constant 0 : index
      %c0_18 = arith.constant 0 : index
      %37 = vector.load %arg7[%c0_17, %c0_18] : memref<16x128xf32, #tpu.memory_space<vmem>>, vector<16x128xf32>
      tpu.vector_store %arg7[%c0_17, %c0_18], %36 {strides = array<i32>} : memref<16x128xf32, #tpu.memory_space<vmem>>, vector<16x128xf32>,
    }
    %c0_9 = arith.constant 0 : index
    %c0_10 = arith.constant 0 : index
    %11 = vector.load %arg7[%c0_9, %c0_10] : memref<16x128xf32, #tpu.memory_space<vmem>>, vector<16x128xf32>
    %12 = arith.truncf %11 : vector<16x128xf32> to vector<16x128xbf16>
    %c0_11 = arith.constant 0 : index
    %c0_12 = arith.constant 0 : index
    %13 = vector.load %arg6[%c0_11, %c0_12] : memref<16x128xbf16, #tpu.memory_space<vmem>>, vector<16x128xbf16>
    tpu.vector_store %arg6[%c0_11, %c0_12], %12 {strides = array<i32>} : memref<16x128xbf16, #tpu.memory_space<vmem>>, vector<16x128xbf16>,
    return
  }
  func.func @transform_0(%arg0: i32, %arg1: memref<2x2xi32, #tpu.memory_space<smem>>, %arg2: memref<2x2xi32, #tpu.memory_space<smem>>, %arg3: memref<2xi32, #tpu.memory_space<smem>>) -> (i32, i32) {
    %c0_i32 = arith.constant 0 : i32
    %c0_i32_0 = arith.constant 0 : i32
    return %arg0, %c0_i32 : i32, i32
  }
  func.func @transform_1(%arg0: i32, %arg1: memref<2x2xi32, #tpu.memory_space<smem>>, %arg2: memref<2x2xi32, #tpu.memory_space<smem>>, %arg3: memref<2xi32, #tpu.memory_space<smem>>) -> (i32, i32) {
    %c0_i32 = arith.constant 0 : i32
    %c0_i32_0 = arith.constant 0 : i32
    %c0_i32_1 = arith.constant 0 : i32
    return %c0_i32, %c0_i32_0 : i32, i32
  }
  func.func @transform_2(%arg0: i32, %arg1: memref<2x2xi32, #tpu.memory_space<smem>>, %arg2: memref<2x2xi32, #tpu.memory_space<smem>>, %arg3: memref<2xi32, #tpu.memory_space<smem>>) -> (i32, i32) {
    %c0_i32 = arith.constant 0 : i32
    %c0_i32_0 = arith.constant 0 : i32
    return %arg0, %c0_i32 : i32, i32
  }
}

</mosaic_0001>

<llo_original>
// kernel: tpu_custom_call.1
$region0: #{tpu_custom_call.1}
  #allocation0 [shape = 'u32[]', space=smem, size = 0x4, offset = 0x4, fixed_abs, tag = 'smem constant byte address 0x4 - core index']
  #allocation1 [shape = 'u32[144,128]{1,0:T(1,128)}', space=vmem, size = 0x12000, scoped, tag = 'internal scratch']
  #allocation2 [shape = 'f32[16,128]{1,0:T(8,128)}', space=vmem, size = 0x2000, scoped, tag = 'scratch operand']
  #allocation3 [shape = 's32[1]{0}', space=sflag, size = 0x4, scoped, tag = 'scoped memory for tpu_custom_call.1']
  #allocation4 [shape = 'u8[1024]{0}', space=smem, size = 0x400, scoped, tag = 'prefetched SMEM operand 0']
  #allocation5 [shape = 'u8[1024]{0}', space=smem, size = 0x400, scoped, tag = 'prefetched SMEM operand 1']
  #allocation6 [shape = 'u8[512]{0}', space=smem, size = 0x200, scoped, tag = 'prefetched SMEM operand 2']
  %s0 = inlined_call_operand.hbm [shape: s32[2,2], index: 0, kind: input, shape index: {}]
  %s1 = inlined_call_operand.hbm [shape: s32[2,2], index: 1, kind: input, shape index: {}]
  %s2 = inlined_call_operand.hbm [shape: s32[2], index: 2, kind: input, shape index: {}]
  %s3 = inlined_call_operand.hbm [shape: s32[32,1], index: 3, kind: input, shape index: {}]
  %s4 = inlined_call_operand.hbm [shape: bf16[512,128], index: 4, kind: input, shape index: {}]
  %s5 = inlined_call_operand.hbm [shape: bf16[32,128], index: 5, kind: output, shape index: {}]
  %s6 = sld [smem:[#allocation0]]
  $region56: #{tpu_custom_call.1} parent=0
    _
  %s8 = ssub.s32 1, %s6
  %s9 = scalar_select 0, %s8, %s6
  %11 = dma.hbm_to_smem %s0, 32, [#allocation4], [#allocation3]
  %13 = dma.hbm_to_smem %s1, 32, [#allocation5], [#allocation3]
  %15 = dma.hbm_to_smem %s2, 16, [#allocation6], [#allocation3]
  %16 = dma.done [#allocation3], 80
  %17 = sfence
  $region1: #{tpu_custom_call.1} parent=0
    #allocation7 [shape = 'u8[16384]{0}', space=vmem, size = 0x4000, scoped, tag = 'input window, operand 3']
    #allocation8 [shape = 's32[2]{0}', space=sflag, size = 0x8, scoped, tag = 'scoped memory for tpu_custom_call.1']
    #allocation9 [shape = 's32[2]{0}', space=sflag, size = 0x8, scoped, tag = 'scoped memory for tpu_custom_call.1']
    #allocation10 [shape = 'u8[131072]{0}', space=vmem, size = 0x20000, scoped, tag = 'input window, operand 4, single buffered']
    #allocation11 [shape = 's32[1]{0}', space=sflag, size = 0x4, scoped, tag = 'scoped memory for tpu_custom_call.1']
    #allocation12 [shape = 'u8[8192]{0}', space=vmem, size = 0x2000, scoped, tag = 'output window, operand 0']
    %18 = vsyncpa [#allocation8], 0
    %s19 = scalar_lea.sflag [#allocation8], 1
    %20 = vsyncpa %s19, 0
    %21 = vsyncpa [#allocation11], 0
    %22 = vsyncpa [#allocation9], 0
    %s23 = scalar_lea.sflag [#allocation9], 1
    %24 = vsyncpa %s23, 0
    loop: start=0, step=1, limit=4
    $region2: #{tpu_custom_call.1} parent=1 // loop_pre_header
      _
    $region3: #{tpu_custom_call.1} parent=1 // loop_header
      %s26 = sphi 0, %s30
      %p27 = scmp.ge.s32.totalorder %s26, 4
      %s36 = sphi 0, %s38
      %s39 = sphi 0, %s36
      %s40 = sphi 0, %s39
      %s56 = sphi 0, %s40
      %s60 = sphi 0, %s60
      %s62 = sphi 0, %s60
      %s63 = sphi 0, %s62
      %s77 = sphi 0, %s63
      %s83 = sphi 0, %s85
      %s86 = sphi 0, %s83
      %s87 = sphi 0, %s86
      %s103 = sphi 0, %s87
    $region4: #{tpu_custom_call.1} parent=1 // loop_header_branch
      %29 = sbr.rel (%p27) target = $region8
    $region5: #{tpu_custom_call.1} parent=1 // loop_body
      %s31 = ssub.s32 %s26, 1
      %s32 = ssub.s32 %s26, 2
      %s33 = sadd.s32 %s26, 1
      %s34 = ssub.s32 %s26, %s33
      %p35 = scmp.eq.s32.totalorder %s34, 0
      %s37 = sadd.s32 %s36, 1
      %s38 = scalar_select %p35, %s36, %s37
      %p41 = pneg %p35
      %p42 = scmp.eq.s32.totalorder %s26, 1
      %p43 = por %p41, %p42
      %p44 = scmp.ne.s32.totalorder %s36, %s39
      %p45 = scmp.eq.s32.totalorder %s26, 0
      %p46 = por %p44, %p45
      %p47 = scmp.ne.s32.totalorder %s36, %s39
      %p48 = scmp.eq.s32.totalorder %s31, 1
      %p49 = por %p47, %p48
      %p50 = scmp.ne.s32.totalorder %s39, %s40
      %p51 = scmp.eq.s32.totalorder %s31, 0
      %p52 = por %p50, %p51
      %p53 = scmp.ne.s32.totalorder %s39, %s40
      %p54 = scmp.eq.s32.totalorder %s32, 1
      %p55 = por %p53, %p54
      %p57 = scmp.ne.s32.totalorder %s40, %s56
      %p58 = scmp.eq.s32.totalorder %s32, 0
      %p59 = por %p57, %p58
      %s61 = sadd.s32 %s60, 1
      %p64 = scmp.eq.s32.totalorder %s26, 1
      %p65 = scmp.ne.s32.totalorder %s60, %s62
      %p66 = scmp.eq.s32.totalorder %s26, 0
      %p67 = por %p65, %p66
      %p68 = scmp.ne.s32.totalorder %s60, %s62
      %p69 = scmp.eq.s32.totalorder %s31, 1
      %p70 = por %p68, %p69
      %p71 = scmp.ne.s32.totalorder %s62, %s63
      %p72 = scmp.eq.s32.totalorder %s31, 0
      %p73 = por %p71, %p72
      %p74 = scmp.ne.s32.totalorder %s62, %s63
      %p75 = scmp.eq.s32.totalorder %s32, 1
      %p76 = por %p74, %p75
      %p78 = scmp.ne.s32.totalorder %s63, %s77
      %p79 = scmp.eq.s32.totalorder %s32, 0
      %p80 = por %p78, %p79
      %s81 = ssub.s32 %s26, %s33
      %p82 = scmp.eq.s32.totalorder %s81, 0
      %s84 = sadd.s32 %s83, 1
      %s85 = scalar_select %p82, %s83, %s84
      %p88 = pneg %p82
      %p89 = scmp.eq.s32.totalorder %s26, 1
      %p90 = por %p88, %p89
      %p91 = scmp.ne.s32.totalorder %s83, %s86
      %p92 = scmp.eq.s32.totalorder %s26, 0
      %p93 = por %p91, %p92
      %p94 = scmp.ne.s32.totalorder %s83, %s86
      %p95 = scmp.eq.s32.totalorder %s31, 1
      %p96 = por %p94, %p95
      %p97 = scmp.ne.s32.totalorder %s86, %s87
      %p98 = scmp.eq.s32.totalorder %s31, 0
      %p99 = por %p97, %p98
      %p100 = scmp.ne.s32.totalorder %s86, %s87
      %p101 = scmp.eq.s32.totalorder %s32, 1
      %p102 = por %p100, %p101
      %p104 = scmp.ne.s32.totalorder %s87, %s103
      %p105 = scmp.eq.s32.totalorder %s32, 0
      %p106 = por %p104, %p105
      %p107 = scmp.le.s32.totalorder 1, %s26
      %p108 = scmp.lt.s32.totalorder %s26, 3
      %p109 = pnand %p107, %p108
      %p110 = pneg %p109
      // Predicated region
      $region9: #{tpu_custom_call.1} parent=5 // pred_check
        _
      $region10: #{tpu_custom_call.1} parent=5 // pred_check_branch
        %112 = sbr.rel (%p109) target = $region12
      $region11: #{tpu_custom_call.1} parent=5 // pred_region
        %s113 = ssub.s32 %s26, 1
        // Predicated region
        $region13: #{tpu_custom_call.1} parent=11 // pred_check
          %p114 = pneg %p73
        $region14: #{tpu_custom_call.1} parent=11 // pred_check_branch
          %116 = sbr.rel (%p114) target = $region16
        $region15: #{tpu_custom_call.1} parent=11 // pred_region
          %s118 = ssub.s32 4096, 4096
          %119 = vsyncadd [#allocation11], %s118
          %s120 = sshll.u32 [#allocation10], 4
          %s121 = int_to_ptr.vmem [resolvable:$true] %s120
          %126 = dma.hbm_to_vmem [thread:$0]  %s4, 4096, %s121, [#allocation11], 64, 64, 4
        $region16: #{tpu_custom_call.1} parent=11 // pred_fallthru
          _
      $region12: #{tpu_custom_call.1} parent=5 // pred_fallthru
        _
      %p127 = scmp.lt.s32.totalorder %s26, 2
      // Predicated region
      $region17: #{tpu_custom_call.1} parent=5 // pred_check
        %p128 = pneg %p127
      $region18: #{tpu_custom_call.1} parent=5 // pred_check_branch
        %130 = sbr.rel (%p128) target = $region20
      $region19: #{tpu_custom_call.1} parent=5 // pred_region
        // Predicated region
        $region21: #{tpu_custom_call.1} parent=19 // pred_check
          %p131 = pneg %p46
        $region22: #{tpu_custom_call.1} parent=19 // pred_check_branch
          %133 = sbr.rel (%p131) target = $region24
        $region23: #{tpu_custom_call.1} parent=19 // pred_region
          %s134 = sand.u32 %s36, 1
          %s135 = scalar_lea.sflag [#allocation8], %s134
          %s136 = sand.u32 %s36, 1
          %s137 = smul.addr %s136, 16
          %s138 = scalar_lea.vmem [#allocation7], %s137
          %s139 = smul.u32 2, %s26
          %s141 = ssub.s32 256, 256
          %142 = vsyncadd %s135, %s141
          %s143 = smul.addr %s139, 128
          %s144 = scalar_lea.hbm %s3, %s143
          %s145 = sshll.u32 %s138, 4
          %s146 = int_to_ptr.vmem [resolvable:$true] %s145
          %151 = dma.hbm_to_vmem [thread:$0]  %s144, 256, %s146, %s135, 128, 128, 8
        $region24: #{tpu_custom_call.1} parent=19 // pred_fallthru
          _
      $region20: #{tpu_custom_call.1} parent=5 // pred_fallthru
        _
      %p152 = scmp.le.s32.totalorder 1, %s26
      %p153 = scmp.lt.s32.totalorder %s26, 3
      %p154 = pnand %p152, %p153
      %p155 = pneg %p154
      // Predicated region
      $region25: #{tpu_custom_call.1} parent=5 // pred_check
        _
      $region26: #{tpu_custom_call.1} parent=5 // pred_check_branch
        %157 = sbr.rel (%p154) target = $region28
      $region27: #{tpu_custom_call.1} parent=5 // pred_region
        %s158 = ssub.s32 %s26, 1
        %s159 = sand.u32 %s39, 1
        %s160 = scalar_lea.sflag [#allocation8], %s159
        %s161 = sand.u32 %s39, 1
        %s162 = smul.addr %s161, 16
        %s163 = scalar_lea.vmem [#allocation7], %s162
        // Predicated region
        $region29: #{tpu_custom_call.1} parent=27 // pred_check
          %p164 = pneg %p52
        $region30: #{tpu_custom_call.1} parent=27 // pred_check_branch
          %166 = sbr.rel (%p164) target = $region32
        $region31: #{tpu_custom_call.1} parent=27 // pred_region
          %167 = dma.done %s160, 256
        $region32: #{tpu_custom_call.1} parent=27 // pred_fallthru
          _
        // Predicated region
        $region33: #{tpu_custom_call.1} parent=27 // pred_check
          %p168 = pneg %p73
        $region34: #{tpu_custom_call.1} parent=27 // pred_check_branch
          %170 = sbr.rel (%p168) target = $region36
        $region35: #{tpu_custom_call.1} parent=27 // pred_region
          %171 = dma.done [#allocation11], 4096
        $region36: #{tpu_custom_call.1} parent=27 // pred_fallthru
          _
        %s172 = sand.u32 %s39, 1
        %s173 = scalar_lea.sflag [#allocation8], %s172
        %s174 = sand.u32 %s39, 1
        %s175 = smul.addr %s174, 16
        %s176 = scalar_lea.vmem [#allocation7], %s175
        %p177 = pneg %p52
        %p178 = pneg %p49
        %p179 = pneg %p73
        %p180 = pneg %p70
        %p181 = pneg %p99
        %p182 = pneg %p96
        %s183 = sand.u32 %s86, 1
        %s184 = scalar_lea.sflag [#allocation9], %s183
        %s185 = sand.u32 %s86, 1
        %s186 = smul.addr %s185, 8
        %s187 = scalar_lea.vmem [#allocation12], %s186
        %s188 = smul.u32 2, %s31
        %s189 = smul.u32 2, %s31
        %191 = vst [vmem:[#allocation2] sm:$0xff] 0.0
        %192 = vst [vmem:[#allocation2 + $0x8] sm:$0xff] 0.0
        %v193 = vld [vmem:[%s163] sm:$0xff]
        %v194 = vld [vmem:[%s163 + $0x8] sm:$0xff]
        %s195 = sld [smem:[#allocation6 + %s31]]
        // While loop
        $region37: #{tpu_custom_call.1} parent=27 // loop_pre_header
          _
        $region38: #{tpu_custom_call.1} parent=27 // loop_header
          %s197 = sphi 0, %s199
          %p198 = scmp.ge.s32.totalorder %s197, %s195
        $region39: #{tpu_custom_call.1} parent=27 // loop_header_branch
          %201 = sbr.rel (%p198) target = $region43
        $region40: #{tpu_custom_call.1} parent=27 // loop_body
          %s202 = sshra.s32 %s197, 7
          %s203 = sand.u32 %s197, 127
          %s204 = sadd.s32 %s202, %s31
          %s205 = smul.u32 %s204, 128
          %s206 = sshra.s32 %s197, 7
          %s207 = sand.u32 %s197, 127
          %s208 = sadd.s32 %s205, %s207
          %s209 = sld [smem:[#allocation5 + %s208]]
          %s210 = sld [smem:[#allocation4 + %s208]]
          %s211 = smul.u32 %s210, 256
          %v212 = vstv %s209
          %v213 = vsub.s32 %v193, %v212
          %v214 = vsub.s32 %v194, %v212
          %v215 = vlaneseq
          %v216 = vand.u32 %v215, 127
          %v217 = vadd.s32 %v216, 128
          %218 = vset.pattern.permute.xlu0 0
          %219 = vperm.xlu0 %218, %v213
          %v220 = vpop.permute.xlu0 %219
          %221 = vset.pattern.permute.xlu0 0
          %222 = vperm.xlu0 %221, %v214
          %v223 = vpop.permute.xlu0 %222
          %vm224 = vcmp.eq.s32.totalorder %v216, %v220
          %vm225 = vcmp.eq.s32.totalorder %v217, %v220
          %vm226 = vcmp.eq.s32.totalorder %v216, %v223
          %vm227 = vcmp.eq.s32.totalorder %v217, %v223
          %v228 = vsel %vm224, 1, 0
          %v229 = vsel %vm225, 1, 0
          %v230 = vsel %vm226, 1, 0
          %v231 = vsel %vm227, 1, 0
          %v232 = vcvt.s32.f32 %v228
          %v233 = vcvt.s32.f32 %v229
          %v234 = vcvt.s32.f32 %v230
          %v235 = vcvt.s32.f32 %v231
          %v236 = vpack.c.bf16 %v234, %v232
          %v237 = vpack.c.bf16 %v235, %v233
          %v238 = vld [vmem:[#allocation2] sm:$0xff]
          %v239 = vld [vmem:[#allocation2 + $0x8] sm:$0xff]
          %s240 = sshra.s32 %s211, 3
          %s241 = sand.u32 %s211, 7
          %s242 = smul.addr %s240, 4
          %s243 = scalar_lea.vmem [#allocation10], %s242
          %v244 = vld [vmem:[%s243] sm:$0xf]
          %v245 = vld [vmem:[%s243 + $0x4] sm:$0xf]
          %v246 = vld [vmem:[%s243 + $0x8] sm:$0xf]
          %v247 = vld [vmem:[%s243 + $0xc] sm:$0xf]
          %v248 = vld [vmem:[%s243 + $0x10] sm:$0xf]
          %v249 = vld [vmem:[%s243 + $0x14] sm:$0xf]
          %v250 = vld [vmem:[%s243 + $0x18] sm:$0xf]
          %v251 = vld [vmem:[%s243 + $0x1c] sm:$0xf]
          %v252 = vld [vmem:[%s243 + $0x20] sm:$0xf]
          %v253 = vld [vmem:[%s243 + $0x24] sm:$0xf]
          %v254 = vld [vmem:[%s243 + $0x28] sm:$0xf]
          %v255 = vld [vmem:[%s243 + $0x2c] sm:$0xf]
          %v256 = vld [vmem:[%s243 + $0x30] sm:$0xf]
          %v257 = vld [vmem:[%s243 + $0x34] sm:$0xf]
          %v258 = vld [vmem:[%s243 + $0x38] sm:$0xf]
          %v259 = vld [vmem:[%s243 + $0x3c] sm:$0xf]
          %v260 = vld [vmem:[%s243 + $0x40] sm:$0xf]
          %v261 = vld [vmem:[%s243 + $0x44] sm:$0xf]
          %v262 = vld [vmem:[%s243 + $0x48] sm:$0xf]
          %v263 = vld [vmem:[%s243 + $0x4c] sm:$0xf]
          %v264 = vld [vmem:[%s243 + $0x50] sm:$0xf]
          %v265 = vld [vmem:[%s243 + $0x54] sm:$0xf]
          %v266 = vld [vmem:[%s243 + $0x58] sm:$0xf]
          %v267 = vld [vmem:[%s243 + $0x5c] sm:$0xf]
          %v268 = vld [vmem:[%s243 + $0x60] sm:$0xf]
          %v269 = vld [vmem:[%s243 + $0x64] sm:$0xf]
          %v270 = vld [vmem:[%s243 + $0x68] sm:$0xf]
          %v271 = vld [vmem:[%s243 + $0x6c] sm:$0xf]
          %v272 = vld [vmem:[%s243 + $0x70] sm:$0xf]
          %v273 = vld [vmem:[%s243 + $0x74] sm:$0xf]
          %v274 = vld [vmem:[%s243 + $0x78] sm:$0xf]
          %v275 = vld [vmem:[%s243 + $0x7c] sm:$0xf]
          %v308 = vunpack.c.l.b16 %v244
          %v309 = vunpack.c.l.b16 %v245
          %v310 = vunpack.c.l.b16 %v246
          %v311 = vunpack.c.l.b16 %v247
          %v312 = vunpack.c.l.b16 %v248
          %v313 = vunpack.c.l.b16 %v249
          %v314 = vunpack.c.l.b16 %v250
          %v315 = vunpack.c.l.b16 %v251
          %v316 = vunpack.c.l.b16 %v252
          %v317 = vunpack.c.l.b16 %v253
          %v318 = vunpack.c.l.b16 %v254
          %v319 = vunpack.c.l.b16 %v255
          %v320 = vunpack.c.l.b16 %v256
          %v321 = vunpack.c.l.b16 %v257
          %v322 = vunpack.c.l.b16 %v258
          %v323 = vunpack.c.l.b16 %v259
          %v324 = vunpack.c.l.b16 %v260
          %v325 = vunpack.c.l.b16 %v261
          %v326 = vunpack.c.l.b16 %v262
          %v327 = vunpack.c.l.b16 %v263
          %v328 = vunpack.c.l.b16 %v264
          %v329 = vunpack.c.l.b16 %v265
          %v330 = vunpack.c.l.b16 %v266
          %v331 = vunpack.c.l.b16 %v267
          %v332 = vunpack.c.l.b16 %v268
          %v333 = vunpack.c.l.b16 %v269
          %v334 = vunpack.c.l.b16 %v270
          %v335 = vunpack.c.l.b16 %v271
          %v336 = vunpack.c.l.b16 %v272
          %v337 = vunpack.c.l.b16 %v273
          %v338 = vunpack.c.l.b16 %v274
          %v339 = vunpack.c.l.b16 %v275
          %v340 = vpack.c.b16 %v309, %v308
          %v341 = vpack.c.b16 %v311, %v310
          %v342 = vpack.c.b16 %v313, %v312
          %v343 = vpack.c.b16 %v315, %v314
          %v344 = vpack.c.b16 %v317, %v316
          %v345 = vpack.c.b16 %v319, %v318
          %v346 = vpack.c.b16 %v321, %v320
          %v347 = vpack.c.b16 %v323, %v322
          %v348 = vpack.c.b16 %v325, %v324
          %v349 = vpack.c.b16 %v327, %v326
          %v350 = vpack.c.b16 %v329, %v328
          %v351 = vpack.c.b16 %v331, %v330
          %v352 = vpack.c.b16 %v333, %v332
          %v353 = vpack.c.b16 %v335, %v334
          %v354 = vpack.c.b16 %v337, %v336
          %v355 = vpack.c.b16 %v339, %v338
          %372 = vmatprep.subr.bf16.mxu0 0
          %373 = vmatpush1.bf16.msra.mxu0 %v340
          %374 = vmatprep.subr.bf16.mxu0 0
          %375 = vmatpush1.bf16.msra.mxu0 %v341
          %376 = vmatprep.subr.bf16.mxu0 0
          %377 = vmatpush1.bf16.msra.mxu0 %v342
          %378 = vmatprep.subr.bf16.mxu0 0
          %379 = vmatpush1.bf16.msra.mxu0 %v343
          %380 = vmatprep.subr.bf16.mxu0 0
          %381 = vmatpush1.bf16.msra.mxu0 %v344
          %382 = vmatprep.subr.bf16.mxu0 0
          %383 = vmatpush1.bf16.msra.mxu0 %v345
          %384 = vmatprep.subr.bf16.mxu0 0
          %385 = vmatpush1.bf16.msra.mxu0 %v346
          %386 = vmatprep.subr.bf16.mxu0 0
          %387 = vmatpush1.bf16.msra.mxu0 %v347
          %388 = vmatprep.subr.bf16.mxu0 0
          %389 = vmatpush1.bf16.msra.mxu0 %v348
          %390 = vmatprep.subr.bf16.mxu0 0
          %391 = vmatpush1.bf16.msra.mxu0 %v349
          %392 = vmatprep.subr.bf16.mxu0 0
          %393 = vmatpush1.bf16.msra.mxu0 %v350
          %394 = vmatprep.subr.bf16.mxu0 0
          %395 = vmatpush1.bf16.msra.mxu0 %v351
          %396 = vmatprep.subr.bf16.mxu0 0
          %397 = vmatpush1.bf16.msra.mxu0 %v352
          %398 = vmatprep.subr.bf16.mxu0 0
          %399 = vmatpush1.bf16.msra.mxu0 %v353
          %400 = vmatprep.subr.bf16.mxu0 0
          %401 = vmatpush1.bf16.msra.mxu0 %v354
          %402 = vmatprep.subr.bf16.mxu0 0
          %403 = vmatpush1.bf16.msra.mxu0 %v355
          %404 = vmatprep.mubr.bf16.mxu0 %v237
          %405 = vmatmul.mubr.bf16.gmra.mrb[0].mxu0 %v236
          %v406 = vpop.f32.mrb[0].mxu0
          %v407 = vadd.f32 0.0, %v406
          %v408 = vpop.f32.mrb[0].mxu0
          %v409 = vpop.f32.mrb[0].mxu0
          %v410 = vadd.f32 0.0, %v409
          %v411 = vpop.f32.mrb[0].mxu0
          %412 = vdwg.mxu0
          %v413 = vadd.f32 %v238, %v407
          %v414 = vadd.f32 %v239, %v410
          %415 = vst [vmem:[#allocation2] sm:$0xff] %v413
          %416 = vst [vmem:[#allocation2 + $0x8] sm:$0xff] %v414
        $region41: #{tpu_custom_call.1} parent=27 // loop_footer
          %s199 = sadd.s32 %s197, 1
        $region42: #{tpu_custom_call.1} parent=27 // loop_footer_branch
          %196 = sbr.rel target = $region38
        $region43: #{tpu_custom_call.1} parent=27 // loop_exit
          _
        %v417 = vld [vmem:[#allocation2] sm:$0xff]
        %v418 = vld [vmem:[#allocation2 + $0x8] sm:$0xff]
        %v419 = vpack.c.bf16 %v418, %v417
        %v421 = vunpack.c.l.b16 %v419
        %v422 = vunpack.c.h.b16 %v419
        %v423 = vpack.c.b16 %v421, %v421
        %v424 = vpack.c.b16 %v422, %v422
        %427 = vst [vmem:[%s187] sm:$0xf] %v423
        %428 = vst [vmem:[%s187 + $0x4] sm:$0xf] %v424
        %s429 = sand.u32 %s86, 1
        %s430 = scalar_lea.sflag [#allocation9], %s429
        %s431 = sand.u32 %s86, 1
        %s432 = smul.addr %s431, 8
        %s433 = scalar_lea.vmem [#allocation12], %s432
        // Predicated region
        $region44: #{tpu_custom_call.1} parent=27 // pred_check
          %p434 = pneg %p96
        $region45: #{tpu_custom_call.1} parent=27 // pred_check_branch
          %436 = sbr.rel (%p434) target = $region47
        $region46: #{tpu_custom_call.1} parent=27 // pred_region
          %s437 = smul.u32 2, %s31
          %s439 = ssub.s32 128, 128
          %440 = vsyncadd %s430, %s439
          %s441 = smul.addr %s437, 64
          %s442 = scalar_lea.hbm %s5, %s441
          %s443 = sshll.u32 %s433, 4
          %s444 = int_to_ptr.vmem [resolvable:$true] %s443
          %449 = dma.vmem_to_hbm [thread:$0]  %s444, 128, %s442, %s430, 64, 64, 4
        $region47: #{tpu_custom_call.1} parent=27 // pred_fallthru
          _
      $region28: #{tpu_custom_call.1} parent=5 // pred_fallthru
        _
      %p450 = scmp.le.s32.totalorder 2, %s26
      // Predicated region
      $region48: #{tpu_custom_call.1} parent=5 // pred_check
        %p451 = pneg %p450
      $region49: #{tpu_custom_call.1} parent=5 // pred_check_branch
        %453 = sbr.rel (%p451) target = $region51
      $region50: #{tpu_custom_call.1} parent=5 // pred_region
        %s454 = ssub.s32 %s26, 2
        // Predicated region
        $region52: #{tpu_custom_call.1} parent=50 // pred_check
          %p455 = pneg %p102
        $region53: #{tpu_custom_call.1} parent=50 // pred_check_branch
          %457 = sbr.rel (%p455) target = $region55
        $region54: #{tpu_custom_call.1} parent=50 // pred_region
          %s458 = sand.u32 %s87, 1
          %s459 = scalar_lea.sflag [#allocation9], %s458
          %s460 = sand.u32 %s87, 1
          %s461 = smul.addr %s460, 8
          %s462 = scalar_lea.vmem [#allocation12], %s461
          %463 = dma.done %s459, 128
        $region55: #{tpu_custom_call.1} parent=50 // pred_fallthru
          _
      $region51: #{tpu_custom_call.1} parent=5 // pred_fallthru
        _
    $region6: #{tpu_custom_call.1} parent=1 // loop_footer
      %s30 = sadd.s32 1, %s26
    $region7: #{tpu_custom_call.1} parent=1 // loop_footer_branch
      %25 = sbr.rel target = $region3
    $region8: #{tpu_custom_call.1} parent=1 // loop_exit
      _
    %464 = vsyncpa [#allocation8], 1
    %s465 = scalar_lea.sflag [#allocation8], 1
    %466 = vsyncpa %s465, 1
    %467 = vsyncpa [#allocation11], 1
    %468 = vsyncpa [#allocation9], 1
    %s469 = scalar_lea.sflag [#allocation9], 1
    %470 = vsyncpa %s469, 1

</llo_original>
